<compile_context>
chip_gen: v7x
topology: tpu7x:2x2x1
jax: 0.10.0
libtpu: 0.0.40
codegen_flags: <defaults>
</compile_context>

<pallas_src>
import functools

import jax
import jax.numpy as jnp
from jax.experimental import pallas as pl
from jax.experimental.pallas import tpu as pltpu


def _taylor_ce_kernel(logits_ref, labels_ref, out_ref, *, taylor_n, smoothing,
                      batch, block_b, needs_mask):
    x = logits_ref[...].astype(jnp.float32)            # (bb, C), upcast in-register
    bb, C = x.shape

    # TaylorSoftmax numerator 1 + x + x^2/2! + ... + x^n/n! via Horner with
    # precomputed reciprocal factorials (no leading full-tile splat).
    inv_fact = [1.0]
    f = 1.0
    for k in range(1, taylor_n + 1):
        f *= float(k)
        inv_fact.append(1.0 / f)
    fn = x * inv_fact[taylor_n] + inv_fact[taylor_n - 1]
    for k in range(taylor_n - 2, -1, -1):
        fn = fn * x + inv_fact[k]

    # log(taylor_softmax(x)) is already a normalized log-distribution, so the
    # module's second log_softmax is the identity.  With smoothing weights
    # w_c = eps/C + (1-eps)*onehot_c (sum_c w_c == 1) the per-row loss is
    #   -sum_c w_c*(log fn_c - log fn_sum)
    #     = log(fn_sum) - (eps/C)*sum_c log(fn_c) - (1-eps)*log(fn_label).
    L = jnp.log(fn)                                                   # (bb, C)
    sum_log_fn = jnp.sum(L, axis=-1, keepdims=True)                   # (bb, 1)
    log_fn_sum = jnp.log(jnp.sum(fn, axis=-1, keepdims=True))         # (bb, 1)

    col_ids = jax.lax.broadcasted_iota(jnp.int32, (bb, C), 1)
    picked = jnp.sum(jnp.where(col_ids == labels_ref[...], L, 0.0),
                     axis=-1, keepdims=True)                          # (bb, 1)

    row_loss = (log_fn_sum
                - (smoothing / C) * sum_log_fn
                - (1.0 - smoothing) * picked)                         # (bb, 1)

    if needs_mask:
        # Pad rows of the last block hold unspecified data; any NaN/Inf they
        # produce stays within those rows and is select-ed away here.
        rows = pl.program_id(0) * block_b + jax.lax.broadcasted_iota(
            jnp.int32, (bb, 1), 0)
        row_loss = jnp.where(rows < batch, row_loss, 0.0)

    # One lane-dense, (8,128)-aligned partial tile per grid step.  Distinct
    # tiles + "parallel" batch axis -> both v7x TensorCores can participate.
    out_ref[...] = jnp.broadcast_to(jnp.sum(row_loss), (1, 8, 128))


def _vmem_plan():
    """(vmem_limit_bytes, per-block working-set budget) by TPU generation."""
    cap = 128 * 1024 * 1024
    try:
        cap = int(getattr(pltpu.get_tpu_info(), "vmem_capacity_bytes", cap))
    except Exception:
        pass
    if cap <= 64 * 1024 * 1024:
        # v7x-class: 64 MiB per-TC VMEM -> smaller blocks, <=48 MiB scoped.
        return 48 * 1024 * 1024, 16 * 1024 * 1024
    # v5e/v6e-class: 128 MiB physical -> bigger blocks amortize per-step cost.
    return 80 * 1024 * 1024, 40 * 1024 * 1024


def _choose_block_b(B, C, in_itemsize, work_budget):
    # Real per-block working set: 2x double-buffered native-dtype logits block
    # PLUS ~4 live (block_b, C) f32/i32 temporaries (x, fn, log(fn), col_ids).
    bytes_per_row = C * (2 * in_itemsize + 4 * 4)
    bb = work_budget // max(1, bytes_per_row)
    bb = min(bb, 1024)                      # diminishing returns above ~1k rows
    if bb >= B:
        return B                            # single block, no pad-row masking
    bb = max(8, (bb // 8) * 8)              # sublane multiple of 8
    return min(bb, B)


def taylor_cross_entropy_loss(logits, labels, *, n=2, smoothing=0.2, block_b=None):
    """logits: (B, C) float32/bf16, labels: (B,) int. Returns scalar float32."""
    assert n % 2 == 0 and n >= 2
    B, C = logits.shape
    labels2d = labels.astype(jnp.int32).reshape(B, 1)

    vmem_limit, work_budget = _vmem_plan()
    if block_b is None:
        block_b = _choose_block_b(B, C, jnp.dtype(logits.dtype).itemsize,
                                  work_budget)
    num_blocks = pl.cdiv(B, block_b)
    needs_mask = (B % block_b) != 0

    kernel = functools.partial(
        _taylor_ce_kernel,
        taylor_n=n,
        smoothing=float(smoothing),
        batch=B,
        block_b=block_b,
        needs_mask=needs_mask,
    )

    partials = pl.pallas_call(
        kernel,
        out_shape=jax.ShapeDtypeStruct((num_blocks, 8, 128), jnp.float32),
        grid=(num_blocks,),
        in_specs=[
            pl.BlockSpec((block_b, C), lambda i: (i, 0)),
            pl.BlockSpec((block_b, 1), lambda i: (i, 0)),
        ],
        out_specs=pl.BlockSpec((1, 8, 128), lambda i: (i, 0, 0)),
        compiler_params=pltpu.CompilerParams(
            dimension_semantics=("parallel",),
            vmem_limit_bytes=vmem_limit,
        ),
    )(logits, labels2d)

    # Per-block partial sums; apply the 1/B mean scale exactly once here.
    return jnp.sum(partials[:, 0, 0]) / B


def _reference(logits, labels, *, n=2, smoothing=0.2):
    # Pure-JAX reference mirroring the PyTorch module semantics exactly
    # (including its redundant second log_softmax).
    x = logits.astype(jnp.float32)
    B, C = x.shape
    fn = jnp.ones_like(x)
    denor = 1.0
    for i in range(1, n + 1):
        denor *= float(i)
        fn = fn + x ** i / denor
    probs = fn / jnp.sum(fn, axis=1, keepdims=True)
    log_probs = jnp.log(probs)
    log_preds = jax.nn.log_softmax(log_probs, axis=-1)
    smooth = jnp.mean(-jnp.sum(log_preds, axis=-1))
    nll = jnp.mean(
        -jnp.take_along_axis(log_preds, labels[:, None].astype(jnp.int32), axis=1)[:, 0]
    )
    return smoothing * (smooth / C) + (1.0 - smoothing) * nll


if __name__ == "__main__":
    key = jax.random.PRNGKey(0)
    k1, k2, k3, k4, k5, k6 = jax.random.split(key, 6)

    # Case 1: single-block path (B=8, C=16), f32.
    B, C = 8, 16
    logits = jax.random.normal(k1, (B, C), dtype=jnp.float32)
    labels = jax.random.randint(k2, (B,), 0, C, dtype=jnp.int32)
    loss = jax.block_until_ready(taylor_cross_entropy_loss(logits, labels, n=2, smoothing=0.2))
    ref = _reference(logits, labels, n=2, smoothing=0.2)
    assert jnp.allclose(loss, ref, atol=1e-5, rtol=1e-5), (loss, ref)

    # Case 2: multi-block + padded-last-block masked path (B=10, block_b=8).
    B2, C2 = 10, 16
    logits2 = jax.random.normal(k3, (B2, C2), dtype=jnp.float32)
    labels2 = jax.random.randint(k4, (B2,), 0, C2, dtype=jnp.int32)
    loss2 = jax.block_until_ready(
        taylor_cross_entropy_loss(logits2, labels2, n=2, smoothing=0.2, block_b=8))
    ref2 = _reference(logits2, labels2, n=2, smoothing=0.2)
    assert jnp.allclose(loss2, ref2, atol=1e-5, rtol=1e-5), (loss2, ref2)

    # Case 3: bf16 logits, multi-block, no mask (B=16, C=24, block_b=8).
    B3, C3 = 16, 24
    logits3 = jax.random.normal(k5, (B3, C3), dtype=jnp.float32).astype(jnp.bfloat16)
    labels3 = jax.random.randint(k6, (B3,), 0, C3, dtype=jnp.int32)
    loss3 = jax.block_until_ready(
        taylor_cross_entropy_loss(logits3, labels3, n=2, smoothing=0.2, block_b=8))
    ref3 = _reference(logits3, labels3, n=2, smoothing=0.2)
    assert jnp.allclose(loss3, ref3, atol=1e-5, rtol=1e-5), (loss3, ref3)

    print("KERNEL_OK")
</pallas_src>

<mosaic_0001>
module attributes {stable_mosaic.version = 11 : i64} {
  func.func @_taylor_ce_kernel(%arg0: i32, %arg1: memref<8x16xf32, #tpu.memory_space<vmem>>, %arg2: memref<8x1xi32, #tpu.memory_space<vmem>>, %arg3: memref<1x8x128xf32, #tpu.memory_space<vmem>>) attributes {dimension_semantics = [#tpu.dimension_semantics<parallel>], iteration_bounds = array<i64: 1>, scalar_prefetch = 0 : i64, scratch_operands = 0 : i64, tpu.core_type = #tpu.core_type<tc>, window_params = [{transform_indices = @transform_0, window_bounds = array<i64: 8, 16>}, {transform_indices = @transform_1, window_bounds = array<i64: 8, 1>}, {transform_indices = @transform_2, window_bounds = array<i64: 1, 8, 128>}]} {
    %c0 = arith.constant 0 : index
    %c0_0 = arith.constant 0 : index
    %0 = vector.load %arg1[%c0, %c0_0] : memref<8x16xf32, #tpu.memory_space<vmem>>, vector<8x16xf32>
    %cst = arith.constant 5.000000e-01 : f32
    %1 = vector.broadcast %cst : f32 to vector<8x16xf32>
    %2 = arith.mulf %0, %1 : vector<8x16xf32>
    %cst_1 = arith.constant 1.000000e+00 : f32
    %3 = vector.broadcast %cst_1 : f32 to vector<8x16xf32>
    %4 = arith.addf %2, %3 : vector<8x16xf32>
    %5 = arith.mulf %4, %0 : vector<8x16xf32>
    %cst_2 = arith.constant 1.000000e+00 : f32
    %6 = vector.broadcast %cst_2 : f32 to vector<8x16xf32>
    %7 = arith.addf %5, %6 : vector<8x16xf32>
    %8 = math.log %7 : vector<8x16xf32>
    %cst_3 = arith.constant dense<0.000000e+00> : vector<8xf32>
    %9 = vector.multi_reduction <add>, %8, %cst_3 [1] : vector<8x16xf32> to vector<8xf32>
    %10 = vector.shape_cast %9 : vector<8xf32> to vector<8x1xf32>
    %cst_4 = arith.constant dense<0.000000e+00> : vector<8xf32>
    %11 = vector.multi_reduction <add>, %7, %cst_4 [1] : vector<8x16xf32> to vector<8xf32>
    %12 = vector.shape_cast %11 : vector<8xf32> to vector<8x1xf32>
    %13 = math.log %12 : vector<8x1xf32>
    %14 = tpu.iota {dimensions = array<i32: 1>} : vector<8x16xi32>
    %c0_5 = arith.constant 0 : index
    %c0_6 = arith.constant 0 : index
    %15 = vector.load %arg2[%c0_5, %c0_6] : memref<8x1xi32, #tpu.memory_space<vmem>>, vector<8x1xi32>
    %16 = vector.broadcast %15 : vector<8x1xi32> to vector<8x16xi32>
    %17 = arith.cmpi eq, %14, %16 : vector<8x16xi32>
    %cst_7 = arith.constant 0.000000e+00 : f32
    %18 = vector.broadcast %cst_7 : f32 to vector<8x16xf32>
    %19 = arith.select %17, %8, %18 : vector<8x16xi1>, vector<8x16xf32>
    %cst_8 = arith.constant dense<0.000000e+00> : vector<8xf32>
    %20 = vector.multi_reduction <add>, %19, %cst_8 [1] : vector<8x16xf32> to vector<8xf32>
    %21 = vector.shape_cast %20 : vector<8xf32> to vector<8x1xf32>
    %cst_9 = arith.constant 1.250000e-02 : f32
    %22 = vector.broadcast %cst_9 : f32 to vector<8x1xf32>
    %23 = arith.mulf %22, %10 : vector<8x1xf32>
    %24 = arith.subf %13, %23 : vector<8x1xf32>
    %cst_10 = arith.constant 8.000000e-01 : f32
    %25 = vector.broadcast %cst_10 : f32 to vector<8x1xf32>
    %26 = arith.mulf %25, %21 : vector<8x1xf32>
    %27 = arith.subf %24, %26 : vector<8x1xf32>
    %28 = vector.shape_cast %27 : vector<8x1xf32> to vector<1x8x1xf32>
    %cst_11 = arith.constant dense<0.000000e+00> : vector<1xf32>
    %29 = vector.multi_reduction <add>, %28, %cst_11 [1, 2] : vector<1x8x1xf32> to vector<1xf32>
    %30 = vector.shape_cast %29 : vector<1xf32> to vector<1x1x1xf32>
    %31 = vector.extract %30[0, 0, 0] : f32 from vector<1x1x1xf32>
    %32 = vector.broadcast %31 : f32 to vector<1x8x128xf32>
    %c0_12 = arith.constant 0 : index
    %c0_13 = arith.constant 0 : index
    %c0_14 = arith.constant 0 : index
    %33 = vector.load %arg3[%c0_12, %c0_13, %c0_14] : memref<1x8x128xf32, #tpu.memory_space<vmem>>, vector<1x8x128xf32>
    tpu.vector_store %arg3[%c0_12, %c0_13, %c0_14], %32 {strides = array<i32>} : memref<1x8x128xf32, #tpu.memory_space<vmem>>, vector<1x8x128xf32>,
    return
  }
  func.func @transform_0(%arg0: i32) -> (i32, i32) {
    %c0_i32 = arith.constant 0 : i32
    %c0_i32_0 = arith.constant 0 : i32
    return %arg0, %c0_i32 : i32, i32
  }
  func.func @transform_1(%arg0: i32) -> (i32, i32) {
    %c0_i32 = arith.constant 0 : i32
    %c0_i32_0 = arith.constant 0 : i32
    return %arg0, %c0_i32 : i32, i32
  }
  func.func @transform_2(%arg0: i32) -> (i32, i32, i32) {
    %c0_i32 = arith.constant 0 : i32
    %c0_i32_0 = arith.constant 0 : i32
    %c0_i32_1 = arith.constant 0 : i32
    return %arg0, %c0_i32, %c0_i32_0 : i32, i32, i32
  }
}

</mosaic_0001>

<llo_original>
// kernel: tpu_custom_call.1
$region0: #{tpu_custom_call.1}
  #allocation0 [shape = 'u32[]', space=smem, size = 0x4, offset = 0x4, fixed_abs, tag = 'smem constant byte address 0x4 - core index']
  #allocation1 [shape = 'u32[144,128]{1,0:T(1,128)}', space=vmem, size = 0x12000, scoped, tag = 'internal scratch']
  %s0 = inlined_call_operand.hbm [shape: f32[8,16], index: 0, kind: input, shape index: {}]
  %s1 = inlined_call_operand.hbm [shape: s32[8,1], index: 1, kind: input, shape index: {}]
  %s2 = inlined_call_operand.hbm [shape: f32[1,8,128], index: 2, kind: output, shape index: {}]
  %s3 = sld [smem:[#allocation0]]
  $region26: #{tpu_custom_call.1} parent=0
    _
  %s5 = ssub.s32 1, %s3
  %s6 = scalar_select 0, %s5, %s3
  $region1: #{tpu_custom_call.1} parent=0
    #allocation2 [shape = 'u8[4096]{0}', space=vmem, size = 0x1000, scoped, tag = 'input window, operand 0, single buffered']
    #allocation3 [shape = 's32[1]{0}', space=sflag, size = 0x4, scoped, tag = 'scoped memory for tpu_custom_call.1']
    #allocation4 [shape = 's32[1]{0}', space=sflag, size = 0x4, scoped, tag = 'scoped memory for tpu_custom_call.1']
    #allocation5 [shape = 'u8[4096]{0}', space=vmem, size = 0x1000, scoped, tag = 'input window, operand 1, single buffered']
    #allocation6 [shape = 's32[1]{0}', space=sflag, size = 0x4, scoped, tag = 'scoped memory for tpu_custom_call.1']
    #allocation7 [shape = 'u8[4096]{0}', space=vmem, size = 0x1000, scoped, tag = 'output window, operand 0, single buffered']
    %7 = vsyncpa [#allocation3], 0
    %8 = vsyncpa [#allocation6], 0
    %9 = vsyncpa [#allocation4], 0
    // Predicated region
    $region2: #{tpu_custom_call.1} parent=1 // pred_check
      _
    $region3: #{tpu_custom_call.1} parent=1 // pred_check_branch
      %11 = sbr.rel (0) target = $region5
    $region4: #{tpu_custom_call.1} parent=1 // pred_region
      %s13 = ssub.s32 128, 128
      %14 = vsyncadd [#allocation3], %s13
      %s16 = sshll.u32 [#allocation2], 4
      %s17 = int_to_ptr.vmem [resolvable:$true] %s16
      %19 = dma.hbm_to_vmem [thread:$0]  %s0, 128, %s17, [#allocation3]
    $region5: #{tpu_custom_call.1} parent=1 // pred_fallthru
      _
    // Predicated region
    $region6: #{tpu_custom_call.1} parent=1 // pred_check
      _
    $region7: #{tpu_custom_call.1} parent=1 // pred_check_branch
      %21 = sbr.rel (0) target = $region9
    $region8: #{tpu_custom_call.1} parent=1 // pred_region
      %s23 = ssub.s32 128, 128
      %24 = vsyncadd [#allocation6], %s23
      %s26 = sshll.u32 [#allocation5], 4
      %s27 = int_to_ptr.vmem [resolvable:$true] %s26
      %29 = dma.hbm_to_vmem [thread:$0]  %s1, 128, %s27, [#allocation6]
    $region9: #{tpu_custom_call.1} parent=1 // pred_fallthru
      _
    // Predicated region
    $region10: #{tpu_custom_call.1} parent=1 // pred_check
      _
    $region11: #{tpu_custom_call.1} parent=1 // pred_check_branch
      %31 = sbr.rel (0) target = $region13
    $region12: #{tpu_custom_call.1} parent=1 // pred_region
      %32 = dma.done [#allocation3], 128
    $region13: #{tpu_custom_call.1} parent=1 // pred_fallthru
      _
    // Predicated region
    $region14: #{tpu_custom_call.1} parent=1 // pred_check
      _
    $region15: #{tpu_custom_call.1} parent=1 // pred_check_branch
      %34 = sbr.rel (0) target = $region17
    $region16: #{tpu_custom_call.1} parent=1 // pred_region
      %35 = dma.done [#allocation6], 128
    $region17: #{tpu_custom_call.1} parent=1 // pred_fallthru
      _
    %v36 = vld [vmem:[#allocation2] sm:$0xff]
    %v37 = vmul.f32 %v36, 0.5
    %v38 = vadd.f32 %v37, 1.0
    %v39 = vmul.f32 %v38, %v36
    %v40 = vadd.f32 %v39, 1.0
    %v41 = vlog2.pop %v40
    %v42 = vmul.f32 %v41, 0.6931472
    %vm43 = vcmask 130048
    %v44 = vsel %vm43, %v42, 0.0
    %45 = vadd.xlane.f32.xlu0 %v44
    %v46 = vpop.xlane.xlu0 %45
    %v47 = vsel %vm43, %v40, 0.0
    %48 = vadd.xlane.f32.xlu0 %v47
    %v49 = vpop.xlane.xlu0 %48
    %v50 = vlog2.pop %v49
    %v51 = vmul.f32 %v50, 0.6931472
    %v52 = vlaneseq
    %v53 = vand.u32 %v52, 127
    %v54 = vld [vmem:[#allocation5] sm:$0xff]
    %55 = vset.pattern.permute.xlu0 0
    %56 = vperm.xlu0 %55, %v54
    %v57 = vpop.permute.xlu0 %56
    %vm58 = vcmp.eq.s32.totalorder %v53, %v57
    %v59 = vsel %vm58, %v42, 0.0
    %v60 = vsel %vm43, %v59, 0.0
    %61 = vadd.xlane.f32.xlu0 %v60
    %v62 = vpop.xlane.xlu0 %61
    %v63 = vmul.f32 %v46, 0.0125
    %v64 = vsub.f32 %v51, %v63
    %v65 = vmul.f32 %v62, 0.8
    %v66 = vsub.f32 %v64, %v65
    %vm67 = vcmask 7168
    %v68 = vsel %vm67, %v66, 0.0
    %69 = vadd.xlane.f32.xlu0 %v68
    %v70 = vpop.xlane.xlu0 %69
    %v71 = vrot.slane %v70, 4
    %v72 = vadd.f32 %v70, %v71
    %v73 = vrot.slane %v72, 2
    %v74 = vadd.f32 %v72, %v73
    %v75 = vrot.slane %v74, 1
    %v76 = vadd.f32 %v74, %v75
    %s77 = vtos %v76
    %v78 = vstv %s77
    %79 = vst [vmem:[#allocation7] sm:$0xff] %v78
    // Predicated region
    $region18: #{tpu_custom_call.1} parent=1 // pred_check
      _
    $region19: #{tpu_custom_call.1} parent=1 // pred_check_branch
      %81 = sbr.rel (0) target = $region21
    $region20: #{tpu_custom_call.1} parent=1 // pred_region
      %s83 = ssub.s32 128, 128
      %84 = vsyncadd [#allocation4], %s83
      %s86 = sshll.u32 [#allocation7], 4
      %s87 = int_to_ptr.vmem [resolvable:$true] %s86
      %89 = dma.vmem_to_hbm [thread:$0]  %s87, 128, %s2, [#allocation4]
    $region21: #{tpu_custom_call.1} parent=1 // pred_fallthru
      _
    // Predicated region
    $region22: #{tpu_custom_call.1} parent=1 // pred_check
      _
    $region23: #{tpu_custom_call.1} parent=1 // pred_check_branch
      %91 = sbr.rel (0) target = $region25
    $region24: #{tpu_custom_call.1} parent=1 // pred_region
      %92 = dma.done [#allocation4], 128
    $region25: #{tpu_custom_call.1} parent=1 // pred_fallthru
      _
    %93 = vsyncpa [#allocation3], 1
    %94 = vsyncpa [#allocation6], 1
    %95 = vsyncpa [#allocation4], 1

</llo_original>
